<compile_context>
chip_gen: v5e
topology: v5e:2x2
jax: 0.10.0
libtpu: 0.0.40
codegen_flags: <defaults>
</compile_context>

<pallas_src>
import functools

import jax
import jax.numpy as jnp
from jax.experimental import pallas as pl
from jax.experimental.pallas import tpu as pltpu


def _round_up(v, m):
    return (v + m - 1) // m * m


def _plan_tiles(B, rows, K_pad, hidden_p, stream_bytes, out_bytes,
                budget_bytes=30 * 1024 * 1024):
    """Choose (lane tile tn, images-per-step bt) under an explicit VMEM budget."""
    rows_v = _round_up(rows, 16)          # sublane padding (bf16 tile) for sizing
    tn_candidates = [hidden_p] + [c for c in (1024, 512, 256, 128)
                                  if hidden_p % c == 0]
    tn = tn_candidates[-1]
    base = per_img = 0
    for cand in tn_candidates:
        base = 2 * K_pad * cand * stream_bytes + 2 * rows_v * cand * 4        # W + add
        per_img = (2 * rows_v * K_pad * stream_bytes                          # patches
                   + 3 * rows_v * cand * out_bytes)                           # out + f32 acc
        if base + per_img <= budget_bytes:
            tn = cand
            break
    # Images per step: largest divisor of B, <= 8, keeping >= 2 grid steps
    # (megacore / pipelining) and staying inside the budget.
    bt_max = max(1, min(8, B // 2))
    bt = 1
    for d in range(1, bt_max + 1):
        if B % d == 0 and base + d * per_img <= budget_bytes:
            bt = d
    need = base + bt * per_img
    return tn, bt, need


def _make_kernel(bt):
    def kernel(p_ref, w_ref, add_ref, o_ref):
        # p_ref: (bt, rows, K_pad) stream dtype   w_ref: (K_pad, tn) stream dtype
        # add_ref: (rows, tn) f32                 o_ref: (bt, rows, tn) out dtype
        w = w_ref[...]
        a = add_ref[...]
        for i in range(bt):                       # static unroll over images in the step
            acc = jnp.dot(p_ref[i], w, preferred_element_type=jnp.float32)
            o_ref[i] = (acc + a).astype(o_ref.dtype)
        # TODO(synk): dropout omitted — identity in eval mode (no RNG mask applied).
    return kernel


@functools.partial(jax.jit, static_argnames=("patch_size", "stream_dtype"))
def embeddings_forward(x, conv_w, conv_b, cls_token, pos_emb, *, patch_size,
                       stream_dtype=jnp.bfloat16):
    """x: [B, C, H, W] (NCHW).  conv_w: [hidden, C, P, P] (OIHW).  conv_b: [hidden].
    cls_token: [1, hidden].  pos_emb: [N+1, hidden].  Returns [B, N+1, hidden]."""
    B, C, H, W = x.shape
    P = patch_size
    hidden = conv_w.shape[0]
    assert H % P == 0 and W % P == 0, "non-overlap split requires H, W % patch == 0"
    Hp, Wp = H // P, W // P
    n_patches = Hp * Wp
    K = C * P * P
    rows = n_patches + 1                              # cls slot + patch tokens
    K_pad = _round_up(K, 128)                         # lane-dense contraction dim
    hidden_p = _round_up(hidden, 128)                 # lane-dense output stores

    # --- layout glue (single XLA pass, in the bf16 stream dtype):
    # patch extraction == im2col of the strided conv; feature order (c, ph, pw)
    # matches OIHW weight flattening.
    patches = x.astype(stream_dtype)
    patches = patches.reshape(B, C, Hp, P, Wp, P).transpose(0, 2, 4, 1, 3, 5)
    patches = patches.reshape(B, n_patches, K)
    # One combined pad: prepend the zero cls-slot row and zero-pad K to K_pad.
    patches = jnp.pad(patches, ((0, 0), (1, 0), (0, K_pad - K)))   # [B, rows, K_pad]

    w_mat = conv_w.reshape(hidden, K).T.astype(stream_dtype)       # [K, hidden]
    w_mat = jnp.pad(w_mat, ((0, K_pad - K), (0, hidden_p - hidden)))

    # Fold conv bias + position embedding + cls token into one f32 epilogue term.
    add = jnp.concatenate(
        [cls_token.astype(jnp.float32) + pos_emb[0:1].astype(jnp.float32),
         pos_emb[1:].astype(jnp.float32) + conv_b[None, :].astype(jnp.float32)],
        axis=0)                                                    # [rows, hidden]
    add = jnp.pad(add, ((0, 0), (0, hidden_p - hidden)))

    stream_bytes = jnp.dtype(stream_dtype).itemsize
    out_dtype = x.dtype
    out_bytes = jnp.dtype(out_dtype).itemsize
    tn, bt, need = _plan_tiles(B, rows, K_pad, hidden_p, stream_bytes, out_bytes)
    n_h = hidden_p // tn
    n_bg = B // bt
    vmem_limit = int(min(max(int(need * 1.5) + (2 << 20), 12 << 20), 40 << 20))

    kernel = _make_kernel(bt)

    if n_h == 1:
        # Common case: whole hidden in one lane tile -> W and add are fetched
        # exactly once and stay resident across all grid steps.
        grid = (n_bg,)
        in_specs = [
            pl.BlockSpec((bt, rows, K_pad), lambda g: (g, 0, 0)),
            pl.BlockSpec((K_pad, tn), lambda g: (0, 0)),   # constant index: resident
            pl.BlockSpec((rows, tn), lambda g: (0, 0)),    # constant index: resident
        ]
        out_specs = pl.BlockSpec((bt, rows, tn), lambda g: (g, 0, 0))
        dims = ("parallel",)
    else:
        # Rare fallback (very large hidden): hidden tile outermost so W/add are
        # only re-fetched when the hidden tile changes.
        grid = (n_h, n_bg)
        in_specs = [
            pl.BlockSpec((bt, rows, K_pad), lambda h, g: (g, 0, 0)),
            pl.BlockSpec((K_pad, tn), lambda h, g: (0, h)),
            pl.BlockSpec((rows, tn), lambda h, g: (0, h)),
        ]
        out_specs = pl.BlockSpec((bt, rows, tn), lambda h, g: (g, 0, h))
        dims = ("parallel", "parallel")

    out = pl.pallas_call(
        kernel,
        out_shape=jax.ShapeDtypeStruct((B, rows, hidden_p), out_dtype),
        grid=grid,
        in_specs=in_specs,
        out_specs=out_specs,
        compiler_params=pltpu.CompilerParams(
            dimension_semantics=dims,
            vmem_limit_bytes=vmem_limit,
        ),
    )(patches, w_mat, add)

    if hidden_p != hidden:
        out = out[..., :hidden]      # only toy configs (hidden < 128) hit this slice
    return out


def reference_forward(x, conv_w, conv_b, cls_token, pos_emb, patch_size):
    """Plain-JAX reference mirroring the PyTorch forward (eval mode)."""
    B = x.shape[0]
    hidden = conv_w.shape[0]
    y = jax.lax.conv_general_dilated(
        x, conv_w, window_strides=(patch_size, patch_size), padding="VALID",
        dimension_numbers=("NCHW", "OIHW", "NCHW"),
    ) + conv_b.reshape(1, -1, 1, 1)
    y = y.reshape(B, hidden, -1).transpose(0, 2, 1)     # flatten(2).transpose(-1,-2)
    cls = jnp.broadcast_to(cls_token[None], (B, 1, hidden))
    y = jnp.concatenate([cls, y], axis=1)
    return y + pos_emb[None]


if __name__ == "__main__":
    # Small config consistent with the module:
    #   img_size=16, patch=4, in_channels=3, hidden_size=32, non-overlap split
    B, C, IMG, P, HIDDEN = 2, 3, 16, 4, 32
    N_PATCHES = (IMG // P) * (IMG // P)

    key = jax.random.PRNGKey(0)
    kx, kw, kb, kc, kp = jax.random.split(key, 5)

    x = jax.random.normal(kx, (B, C, IMG, IMG), dtype=jnp.float32)
    conv_w = 0.05 * jax.random.normal(kw, (HIDDEN, C, P, P), dtype=jnp.float32)
    conv_b = 0.05 * jax.random.normal(kb, (HIDDEN,), dtype=jnp.float32)
    # PyTorch inits cls/pos to zeros; use deterministic nonzero values so the
    # broadcast-add paths are actually exercised.
    cls_token = 0.02 * jax.random.normal(kc, (1, HIDDEN), dtype=jnp.float32)
    pos_emb = 0.02 * jax.random.normal(kp, (N_PATCHES + 1, HIDDEN), dtype=jnp.float32)

    # f32-stream run: directly comparable to the f32 conv reference.
    out_f32 = embeddings_forward(x, conv_w, conv_b, cls_token, pos_emb,
                                 patch_size=P, stream_dtype=jnp.float32)
    out_f32 = jax.block_until_ready(out_f32)

    # bf16-stream run (production path): tight check vs a bf16-quantized
    # reference, loose check vs the exact f32 reference.
    out_bf16 = embeddings_forward(x, conv_w, conv_b, cls_token, pos_emb,
                                  patch_size=P, stream_dtype=jnp.bfloat16)
    out_bf16 = jax.block_until_ready(out_bf16)

    ref = reference_forward(x, conv_w, conv_b, cls_token, pos_emb, P)
    ref_q = reference_forward(x.astype(jnp.bfloat16).astype(jnp.float32),
                              conv_w.astype(jnp.bfloat16).astype(jnp.float32),
                              conv_b, cls_token, pos_emb, P)

    assert out_f32.shape == (B, N_PATCHES + 1, HIDDEN), out_f32.shape
    assert out_bf16.shape == (B, N_PATCHES + 1, HIDDEN), out_bf16.shape
    assert jnp.allclose(out_f32, ref, atol=1e-4, rtol=1e-4), \
        float(jnp.max(jnp.abs(out_f32 - ref)))
    assert jnp.allclose(out_bf16, ref_q, atol=2e-3, rtol=2e-3), \
        float(jnp.max(jnp.abs(out_bf16 - ref_q)))
    assert jnp.allclose(out_bf16, ref, atol=5e-2, rtol=5e-2), \
        float(jnp.max(jnp.abs(out_bf16 - ref)))

    print("KERNEL_OK")
</pallas_src>

<mosaic_0001>
module attributes {stable_mosaic.version = 11 : i64} {
  func.func @kernel(%arg0: i32, %arg1: memref<1x17x128xf32, #tpu.memory_space<vmem>>, %arg2: memref<128x128xf32, #tpu.memory_space<vmem>>, %arg3: memref<17x128xf32, #tpu.memory_space<vmem>>, %arg4: memref<1x17x128xf32, #tpu.memory_space<vmem>>) attributes {dimension_semantics = [#tpu.dimension_semantics<parallel>], iteration_bounds = array<i64: 2>, scalar_prefetch = 0 : i64, scratch_operands = 0 : i64, tpu.core_type = #tpu.core_type<tc>, window_params = [{transform_indices = @transform_0, window_bounds = array<i64: 1, 17, 128>}, {pipeline_mode = #tpu.pipeline_mode<synchronous>, transform_indices = @transform_1, window_bounds = array<i64: 128, 128>}, {pipeline_mode = #tpu.pipeline_mode<synchronous>, transform_indices = @transform_2, window_bounds = array<i64: 17, 128>}, {transform_indices = @transform_3, window_bounds = array<i64: 1, 17, 128>}]} {
    %c0 = arith.constant 0 : index
    %c0_0 = arith.constant 0 : index
    %0 = vector.load %arg2[%c0, %c0_0] : memref<128x128xf32, #tpu.memory_space<vmem>>, vector<128x128xf32>
    %c0_1 = arith.constant 0 : index
    %c0_2 = arith.constant 0 : index
    %1 = vector.load %arg3[%c0_1, %c0_2] : memref<17x128xf32, #tpu.memory_space<vmem>>, vector<17x128xf32>
    %c0_3 = arith.constant 0 : index
    %c0_4 = arith.constant 0 : index
    %c0_5 = arith.constant 0 : index
    %2 = vector.load %arg1[%c0_3, %c0_4, %c0_5] : memref<1x17x128xf32, #tpu.memory_space<vmem>>, vector<1x17x128xf32>
    %3 = vector.shape_cast %2 : vector<1x17x128xf32> to vector<17x128xf32>
    %cst = arith.constant dense<0.000000e+00> : vector<17x128xf32>
    %4 = tpu.matmul %3, %0, %cst {dimension_numbers = #tpu.dot_dimension_numbers<[1], [0], [0], [1], [0, 0, 1, 1], [], []>} : vector<17x128xf32>, vector<128x128xf32>, vector<17x128xf32> -> vector<17x128xf32>
    %5 = arith.addf %4, %1 : vector<17x128xf32>
    %c0_6 = arith.constant 0 : index
    %c0_7 = arith.constant 0 : index
    %c0_8 = arith.constant 0 : index
    %6 = vector.load %arg4[%c0_6, %c0_7, %c0_8] : memref<1x17x128xf32, #tpu.memory_space<vmem>>, vector<1x17x128xf32>
    %7 = vector.shape_cast %6 : vector<1x17x128xf32> to vector<17x128xf32>
    %8 = vector.shape_cast %5 : vector<17x128xf32> to vector<1x17x128xf32>
    tpu.vector_store %arg4[%c0_6, %c0_7, %c0_8], %8 {strides = array<i32>} : memref<1x17x128xf32, #tpu.memory_space<vmem>>, vector<1x17x128xf32>,
    return
  }
  func.func @transform_0(%arg0: i32) -> (i32, i32, i32) {
    %c0_i32 = arith.constant 0 : i32
    %c0_i32_0 = arith.constant 0 : i32
    %c0_i32_1 = arith.constant 0 : i32
    return %arg0, %c0_i32, %c0_i32_0 : i32, i32, i32
  }
  func.func @transform_1(%arg0: i32) -> (i32, i32) {
    %c0_i32 = arith.constant 0 : i32
    %c0_i32_0 = arith.constant 0 : i32
    %c0_i32_1 = arith.constant 0 : i32
    return %c0_i32, %c0_i32_0 : i32, i32
  }
  func.func @transform_2(%arg0: i32) -> (i32, i32) {
    %c0_i32 = arith.constant 0 : i32
    %c0_i32_0 = arith.constant 0 : i32
    %c0_i32_1 = arith.constant 0 : i32
    return %c0_i32, %c0_i32_0 : i32, i32
  }
  func.func @transform_3(%arg0: i32) -> (i32, i32, i32) {
    %c0_i32 = arith.constant 0 : i32
    %c0_i32_0 = arith.constant 0 : i32
    %c0_i32_1 = arith.constant 0 : i32
    return %arg0, %c0_i32, %c0_i32_0 : i32, i32, i32
  }
}

</mosaic_0001>

<llo_original>
// kernel: embeddings_forward.1
$region0: #{embeddings_forward.1}
  #allocation0 [shape = 'u32[]', space=smem, size = 0x4, offset = 0x4, fixed_abs, tag = 'smem constant byte address 0x4 - core index']
  #allocation1 [shape = 'u32[72,128]{1,0:T(1,128)}', space=vmem, size = 0x9000, scoped, tag = 'internal scratch']
  %s0 = inlined_call_operand.vmem [shape: f32[2,17,128], index: 0, kind: input, shape index: {}]
  %s1 = inlined_call_operand.vmem [shape: f32[128,128], index: 1, kind: input, shape index: {}]
  %s2 = inlined_call_operand.vmem [shape: f32[17,128], index: 2, kind: input, shape index: {}]
  %s3 = inlined_call_operand.vmem [shape: f32[2,17,128], index: 3, kind: output, shape index: {}]
  %s4 = sld [smem:[#allocation0]]
  $region45: #{embeddings_forward.1} parent=0
    _
  %s6 = ssub.s32 1, %s4
  %s7 = scalar_select 0, %s6, %s4
  loop: start=0, step=1, limit=4
  $region2: #{embeddings_forward.1} parent=0 // loop_pre_header
    _
  $region3: #{embeddings_forward.1} parent=0 // loop_header
    %s9 = sphi 0, %s13
    %p10 = scmp.ge.s32.totalorder %s9, 4
    %s19 = sphi 0, %s21
    %s22 = sphi 0, %s19
    %s23 = sphi 0, %s22
    %s39 = sphi 0, %s23
    %s43 = sphi 0, %s43
    %s45 = sphi 0, %s43
    %s46 = sphi 0, %s45
    %s60 = sphi 0, %s46
    %s64 = sphi 0, %s64
    %s66 = sphi 0, %s64
    %s67 = sphi 0, %s66
    %s81 = sphi 0, %s67
    %s87 = sphi 0, %s89
    %s90 = sphi 0, %s87
    %s91 = sphi 0, %s90
    %s107 = sphi 0, %s91
  $region4: #{embeddings_forward.1} parent=0 // loop_header_branch
    %12 = sbr.rel (%p10) target = $region8
  $region5: #{embeddings_forward.1} parent=0 // loop_body
    %s14 = ssub.s32 %s9, 1
    %s15 = ssub.s32 %s9, 2
    %s16 = sadd.s32 %s9, 1
    %s17 = ssub.s32 %s9, %s16
    %p18 = scmp.eq.s32.totalorder %s17, 0
    %s20 = sadd.s32 %s19, 1
    %s21 = scalar_select %p18, %s19, %s20
    %p24 = pneg %p18
    %p25 = scmp.eq.s32.totalorder %s9, 1
    %p26 = por %p24, %p25
    %p27 = scmp.ne.s32.totalorder %s19, %s22
    %p28 = scmp.eq.s32.totalorder %s9, 0
    %p29 = por %p27, %p28
    %p30 = scmp.ne.s32.totalorder %s19, %s22
    %p31 = scmp.eq.s32.totalorder %s14, 1
    %p32 = por %p30, %p31
    %p33 = scmp.ne.s32.totalorder %s22, %s23
    %p34 = scmp.eq.s32.totalorder %s14, 0
    %p35 = por %p33, %p34
    %p36 = scmp.ne.s32.totalorder %s22, %s23
    %p37 = scmp.eq.s32.totalorder %s15, 1
    %p38 = por %p36, %p37
    %p40 = scmp.ne.s32.totalorder %s23, %s39
    %p41 = scmp.eq.s32.totalorder %s15, 0
    %p42 = por %p40, %p41
    %s44 = sadd.s32 %s43, 1
    %p47 = scmp.eq.s32.totalorder %s9, 1
    %p48 = scmp.ne.s32.totalorder %s43, %s45
    %p49 = scmp.eq.s32.totalorder %s9, 0
    %p50 = por %p48, %p49
    %p51 = scmp.ne.s32.totalorder %s43, %s45
    %p52 = scmp.eq.s32.totalorder %s14, 1
    %p53 = por %p51, %p52
    %p54 = scmp.ne.s32.totalorder %s45, %s46
    %p55 = scmp.eq.s32.totalorder %s14, 0
    %p56 = por %p54, %p55
    %p57 = scmp.ne.s32.totalorder %s45, %s46
    %p58 = scmp.eq.s32.totalorder %s15, 1
    %p59 = por %p57, %p58
    %p61 = scmp.ne.s32.totalorder %s46, %s60
    %p62 = scmp.eq.s32.totalorder %s15, 0
    %p63 = por %p61, %p62
    %s65 = sadd.s32 %s64, 1
    %p68 = scmp.eq.s32.totalorder %s9, 1
    %p69 = scmp.ne.s32.totalorder %s64, %s66
    %p70 = scmp.eq.s32.totalorder %s9, 0
    %p71 = por %p69, %p70
    %p72 = scmp.ne.s32.totalorder %s64, %s66
    %p73 = scmp.eq.s32.totalorder %s14, 1
    %p74 = por %p72, %p73
    %p75 = scmp.ne.s32.totalorder %s66, %s67
    %p76 = scmp.eq.s32.totalorder %s14, 0
    %p77 = por %p75, %p76
    %p78 = scmp.ne.s32.totalorder %s66, %s67
    %p79 = scmp.eq.s32.totalorder %s15, 1
    %p80 = por %p78, %p79
    %p82 = scmp.ne.s32.totalorder %s67, %s81
    %p83 = scmp.eq.s32.totalorder %s15, 0
    %p84 = por %p82, %p83
    %s85 = ssub.s32 %s9, %s16
    %p86 = scmp.eq.s32.totalorder %s85, 0
    %s88 = sadd.s32 %s87, 1
    %s89 = scalar_select %p86, %s87, %s88
    %p92 = pneg %p86
    %p93 = scmp.eq.s32.totalorder %s9, 1
    %p94 = por %p92, %p93
    %p95 = scmp.ne.s32.totalorder %s87, %s90
    %p96 = scmp.eq.s32.totalorder %s9, 0
    %p97 = por %p95, %p96
    %p98 = scmp.ne.s32.totalorder %s87, %s90
    %p99 = scmp.eq.s32.totalorder %s14, 1
    %p100 = por %p98, %p99
    %p101 = scmp.ne.s32.totalorder %s90, %s91
    %p102 = scmp.eq.s32.totalorder %s14, 0
    %p103 = por %p101, %p102
    %p104 = scmp.ne.s32.totalorder %s90, %s91
    %p105 = scmp.eq.s32.totalorder %s15, 1
    %p106 = por %p104, %p105
    %p108 = scmp.ne.s32.totalorder %s91, %s107
    %p109 = scmp.eq.s32.totalorder %s15, 0
    %p110 = por %p108, %p109
    %p111 = scmp.le.s32.totalorder 1, %s9
    %p112 = scmp.lt.s32.totalorder %s9, 3
    %p113 = pnand %p111, %p112
    %p114 = pneg %p113
    // Predicated region
    $region9: #{embeddings_forward.1} parent=5 // pred_check
      _
    $region10: #{embeddings_forward.1} parent=5 // pred_check_branch
      %116 = sbr.rel (%p113) target = $region12
    $region11: #{embeddings_forward.1} parent=5 // pred_region
      %s117 = ssub.s32 %s9, 1
      // Predicated region
      $region13: #{embeddings_forward.1} parent=11 // pred_check
        %p118 = pneg %p56
      $region14: #{embeddings_forward.1} parent=11 // pred_check_branch
        %120 = sbr.rel (%p118) target = $region16
      $region15: #{embeddings_forward.1} parent=11 // pred_region
        _
      $region16: #{embeddings_forward.1} parent=11 // pred_fallthru
        _
      // Predicated region
      $region17: #{embeddings_forward.1} parent=11 // pred_check
        %p121 = pneg %p77
      $region18: #{embeddings_forward.1} parent=11 // pred_check_branch
        %123 = sbr.rel (%p121) target = $region20
      $region19: #{embeddings_forward.1} parent=11 // pred_region
        _
      $region20: #{embeddings_forward.1} parent=11 // pred_fallthru
        _
    $region12: #{embeddings_forward.1} parent=5 // pred_fallthru
      _
    %p124 = scmp.lt.s32.totalorder %s9, 2
    // Predicated region
    $region21: #{embeddings_forward.1} parent=5 // pred_check
      %p125 = pneg %p124
    $region22: #{embeddings_forward.1} parent=5 // pred_check_branch
      %127 = sbr.rel (%p125) target = $region24
    $region23: #{embeddings_forward.1} parent=5 // pred_region
      // Predicated region
      $region25: #{embeddings_forward.1} parent=23 // pred_check
        %p128 = pneg %p29
      $region26: #{embeddings_forward.1} parent=23 // pred_check_branch
        %130 = sbr.rel (%p128) target = $region28
      $region27: #{embeddings_forward.1} parent=23 // pred_region
        %p131 = scmp.lt.s32.totalorder %s9, 1
        %s132 = scalar_select %p131, %s9, 1
        %s133 = smul.addr %s132, 3
        %s134 = smul.addr %s133, 8
        %s135 = scalar_lea.vmem %s0, %s134
      $region28: #{embeddings_forward.1} parent=23 // pred_fallthru
        _
    $region24: #{embeddings_forward.1} parent=5 // pred_fallthru
      _
    %p136 = scmp.le.s32.totalorder 1, %s9
    %p137 = scmp.lt.s32.totalorder %s9, 3
    %p138 = pnand %p136, %p137
    %p139 = pneg %p138
    // Predicated region
    $region29: #{embeddings_forward.1} parent=5 // pred_check
      _
    $region30: #{embeddings_forward.1} parent=5 // pred_check_branch
      %141 = sbr.rel (%p138) target = $region32
    $region31: #{embeddings_forward.1} parent=5 // pred_region
      %s142 = ssub.s32 %s9, 1
      %p143 = scmp.lt.s32.totalorder %s14, 1
      %s144 = scalar_select %p143, %s14, 1
      %s145 = smul.addr %s144, 3
      %s146 = smul.addr %s145, 8
      %s147 = scalar_lea.vmem %s0, %s146
      %p148 = pneg %p35
      %p149 = pneg %p32
      %p150 = pneg %p56
      %p151 = pneg %p53
      %p152 = pneg %p77
      %p153 = pneg %p74
      %p154 = pneg %p103
      %p155 = pneg %p100
      %p156 = scmp.lt.s32.totalorder %s14, 1
      %s157 = scalar_select %p156, %s14, 1
      %s158 = smul.addr %s157, 3
      %s159 = smul.addr %s158, 8
      %s160 = scalar_lea.vmem %s3, %s159
      %p161 = scmp.lt.s32.totalorder %s14, 1
      %s162 = scalar_select %p161, %s14, 1
      %s163 = smul.addr %s162, 3
      %s164 = smul.addr %s163, 8
      %s165 = scalar_lea.vmem %s0, %s164
      %p166 = scmp.lt.s32.totalorder %s14, 1
      %s167 = scalar_select %p166, %s14, 1
      %s168 = smul.addr %s167, 3
      %s169 = smul.addr %s168, 8
      %s170 = scalar_lea.vmem %s3, %s169
      %v171 = vld [vmem:[%s1] sm:$0xff]
      %v172 = vld [vmem:[%s1 + $0x8] sm:$0xff]
      %v173 = vld [vmem:[%s1 + $0x10] sm:$0xff]
      %v174 = vld [vmem:[%s1 + $0x18] sm:$0xff]
      %v175 = vld [vmem:[%s1 + $0x20] sm:$0xff]
      %v176 = vld [vmem:[%s1 + $0x28] sm:$0xff]
      %v177 = vld [vmem:[%s1 + $0x30] sm:$0xff]
      %v178 = vld [vmem:[%s1 + $0x38] sm:$0xff]
      %v179 = vld [vmem:[%s1 + $0x40] sm:$0xff]
      %v180 = vld [vmem:[%s1 + $0x48] sm:$0xff]
      %v181 = vld [vmem:[%s1 + $0x50] sm:$0xff]
      %v182 = vld [vmem:[%s1 + $0x58] sm:$0xff]
      %v183 = vld [vmem:[%s1 + $0x60] sm:$0xff]
      %v184 = vld [vmem:[%s1 + $0x68] sm:$0xff]
      %v185 = vld [vmem:[%s1 + $0x70] sm:$0xff]
      %v186 = vld [vmem:[%s1 + $0x78] sm:$0xff]
      %v187 = vld [vmem:[%s2] sm:$0xff]
      %v188 = vld [vmem:[%s2 + $0x8] sm:$0xff]
      %v189 = vld [vmem:[%s2 + $0x10] sm:$0x1]
      %v190 = vld [vmem:[%s165] sm:$0xff]
      %v191 = vld [vmem:[%s165 + $0x8] sm:$0xff]
      %v192 = vld [vmem:[%s165 + $0x10] sm:$0x1]
      %193 = vmatpush.msra.mxu0 %v186
      %194 = vmatpush.msra.mxu0 %v185
      %195 = vmatpush.msra.mxu0 %v184
      %196 = vmatpush.msra.mxu0 %v183
      %197 = vmatpush.msra.mxu0 %v182
      %198 = vmatpush.msra.mxu0 %v181
      %199 = vmatpush.msra.mxu0 %v180
      %200 = vmatpush.msra.mxu0 %v179
      %201 = vmatpush.msra.mxu0 %v178
      %202 = vmatpush.msra.mxu0 %v177
      %203 = vmatpush.msra.mxu0 %v176
      %204 = vmatpush.msra.mxu0 %v175
      %205 = vmatpush.msra.mxu0 %v174
      %206 = vmatpush.msra.mxu0 %v173
      %207 = vmatpush.msra.mxu0 %v172
      %208 = vmatpush.msra.mxu0 %v171
      %209 = vmatmul.f32.gmra.mxu0 %v190
      %v210 = vpop.f32.mrf.mxu0
      %v211 = vadd.f32 %v187, %v210
      %212 = vmatmul.f32.gmra.mxu0 %v191
      %v213 = vpop.f32.mrf.mxu0
      %v214 = vadd.f32 %v188, %v213
      %215 = vmatmul.f32.gmra.mxu0 %v192
      %v216 = vpop.f32.mrf.mxu0
      %v217 = vadd.f32 %v189, %v216
      %218 = vdwg.mxu0
      %219 = vst [vmem:[%s170] sm:$0xff] %v211
      %220 = vst [vmem:[%s170 + $0x8] sm:$0xff] %v214
      %221 = vst [vmem:[%s170 + $0x10] sm:$0x1] %v217
      %p222 = scmp.lt.s32.totalorder %s14, 1
      %s223 = scalar_select %p222, %s14, 1
      %s224 = smul.addr %s223, 3
      %s225 = smul.addr %s224, 8
      %s226 = scalar_lea.vmem %s3, %s225
      // Predicated region
      $region33: #{embeddings_forward.1} parent=31 // pred_check
        %p227 = pneg %p100
      $region34: #{embeddings_forward.1} parent=31 // pred_check_branch
        %229 = sbr.rel (%p227) target = $region36
      $region35: #{embeddings_forward.1} parent=31 // pred_region
        _
      $region36: #{embeddings_forward.1} parent=31 // pred_fallthru
        _
    $region32: #{embeddings_forward.1} parent=5 // pred_fallthru
      _
    %p230 = scmp.le.s32.totalorder 2, %s9
    // Predicated region
    $region37: #{embeddings_forward.1} parent=5 // pred_check
      %p231 = pneg %p230
    $region38: #{embeddings_forward.1} parent=5 // pred_check_branch
      %233 = sbr.rel (%p231) target = $region40
    $region39: #{embeddings_forward.1} parent=5 // pred_region
      %s234 = ssub.s32 %s9, 2
      // Predicated region
      $region41: #{embeddings_forward.1} parent=39 // pred_check
        %p235 = pneg %p106
      $region42: #{embeddings_forward.1} parent=39 // pred_check_branch
        %237 = sbr.rel (%p235) target = $region44
      $region43: #{embeddings_forward.1} parent=39 // pred_region
        %p238 = scmp.lt.s32.totalorder %s15, 1
        %s239 = scalar_select %p238, %s15, 1
        %s240 = smul.addr %s239, 3
        %s241 = smul.addr %s240, 8
        %s242 = scalar_lea.vmem %s3, %s241
      $region44: #{embeddings_forward.1} parent=39 // pred_fallthru
        _
    $region40: #{embeddings_forward.1} parent=5 // pred_fallthru
      _
  $region6: #{embeddings_forward.1} parent=0 // loop_footer
    %s13 = sadd.s32 1, %s9
  $region7: #{embeddings_forward.1} parent=0 // loop_footer_branch
    %8 = sbr.rel target = $region3
  $region8: #{embeddings_forward.1} parent=0 // loop_exit
    _

</llo_original>
